<compile_context>
chip_gen: v5e
topology: v5e:2x2
jax: 0.10.0
libtpu: 0.0.40
codegen_flags: <defaults>
</compile_context>

<pallas_src>
import functools

import jax
import jax.numpy as jnp
from jax.experimental import pallas as pl
from jax.experimental.pallas import tpu as pltpu


# ----------------------------------------------------------------------------
# Fused EMA update kernel: dst = m*dst + (1-m)*src   (blend always in f32)
# ----------------------------------------------------------------------------
_EMA_LANES = 512        # lane width of the fused buffers (multiple of 128)
_EMA_BLOCK_ROWS = 1024  # (1024, 512) f32 block = 2 MiB per buffer


def _ema_kernel(mom_ref, src_ref, dst_ref, out_ref):
    # mom_ref: (1,1) f32 in SMEM (runtime scalar -> no recompile on schedule)
    m = mom_ref[0, 0]
    s = src_ref[...].astype(jnp.float32)
    d = dst_ref[...].astype(jnp.float32)
    out_ref[...] = m * d + (1.0 - m) * s


def _choose_block_rows(rows):
    """Big lane-dense blocks, but keep >=2 grid steps when possible (megacore)."""
    if rows <= 16:
        return rows                                  # full extent (always legal)
    br = min(_EMA_BLOCK_ROWS, rows)
    if pl.cdiv(rows, br) < 2:                        # ensure >=2 steps for 2 TCs
        br = max(8, ((-(-rows // 2)) + 7) // 8 * 8)
    if br % 8 != 0 and br != rows:
        br = ((br + 7) // 8) * 8
    return br


def _ema_update_flat(momentum, src2d, dst2d):
    """Fused in-place EMA blend over the persistent flat buffers."""
    rows, lanes = dst2d.shape
    block_rows = _choose_block_rows(rows)
    grid = (pl.cdiv(rows, block_rows),)

    return pl.pallas_call(
        _ema_kernel,
        out_shape=jax.ShapeDtypeStruct((rows, lanes), dst2d.dtype),
        grid_spec=pltpu.PrefetchScalarGridSpec(
            num_scalar_prefetch=0,
            grid=grid,
            in_specs=[
                pl.BlockSpec(memory_space=pltpu.MemorySpace.SMEM),     # momentum
                pl.BlockSpec((block_rows, lanes), lambda i: (i, 0)),   # src
                pl.BlockSpec((block_rows, lanes), lambda i: (i, 0)),   # dst
            ],
            out_specs=pl.BlockSpec((block_rows, lanes), lambda i: (i, 0)),
        ),
        input_output_aliases={2: 0},                  # dst updated in place
        compiler_params=pltpu.CompilerParams(
            dimension_semantics=("parallel",),
            vmem_limit_bytes=32 * 1024 * 1024),
    )(momentum, src2d, dst2d)


# ----------------------------------------------------------------------------
# dst.forward(): 1x1 conv + bias + ReLU, channel-major, lane-dense output
# ----------------------------------------------------------------------------
def _pw_conv_relu_kernel_vpu(x_ref, w_ref, b_ref, o_ref):
    # x_ref: (1, Cin, TM) VMEM; w_ref: (Cout, Cin) SMEM; b_ref: (Cout,) SMEM
    x = x_ref[0].astype(jnp.float32)                 # (Cin, TM), TM on lanes
    cin = x.shape[0]
    cout = o_ref.shape[1]
    for co in range(cout):                           # tiny static unroll
        acc = x[0] * w_ref[co, 0]                    # scalar x vector FMAs
        for c in range(1, cin):
            acc = acc + x[c] * w_ref[co, c]
        acc = acc + b_ref[co]
        o_ref[0, co, :] = jnp.maximum(acc, 0.0).astype(o_ref.dtype)


def _pw_conv_relu_kernel_mxu(x_ref, w_ref, b_ref, o_ref):
    # Size-gated MXU branch for large channel counts.
    x = x_ref[0].astype(jnp.float32)                 # (Cin, TM)
    w = w_ref[...].astype(jnp.float32)               # (Cout, Cin)
    b = b_ref[...].astype(jnp.float32)               # (Cout, 1)
    acc = jnp.dot(w, x, preferred_element_type=jnp.float32) + b
    o_ref[0] = jnp.maximum(acc, 0.0).astype(o_ref.dtype)


def dst_forward(x_nchw, params, *, tm=8192):
    """Forward of the EMA (dst) module on NCHW input (no transposes)."""
    w, b = params["weight"], params["bias"]           # w: (Cout, Cin, 1, 1)
    n, cin, h, wd = x_nchw.shape
    cout = w.shape[0]
    hw = h * wd

    x3d = x_nchw.reshape(n, cin, hw)                  # NCHW -> (N, C, H*W)
    w2d = w.reshape(cout, cin)

    if hw % 128 == 0:
        tm_eff = min(tm, hw)                          # lane-dense, mult. of 128
    else:
        tm_eff = hw                                   # full-extent lane block
    grid = (n, pl.cdiv(hw, tm_eff))

    use_mxu = (cin >= 32 and cout >= 32)              # MXU only when it pays off
    if use_mxu:
        kern = _pw_conv_relu_kernel_mxu
        w_spec = pl.BlockSpec((cout, cin), lambda i, j: (0, 0))
        b_spec = pl.BlockSpec((cout, 1), lambda i, j: (0, 0))
        b_arg = b.reshape(cout, 1)
    else:
        kern = _pw_conv_relu_kernel_vpu
        w_spec = pl.BlockSpec(memory_space=pltpu.MemorySpace.SMEM)
        b_spec = pl.BlockSpec(memory_space=pltpu.MemorySpace.SMEM)
        b_arg = b

    out3d = pl.pallas_call(
        kern,
        out_shape=jax.ShapeDtypeStruct((n, cout, hw), x_nchw.dtype),
        grid_spec=pltpu.PrefetchScalarGridSpec(
            num_scalar_prefetch=0,
            grid=grid,
            in_specs=[
                pl.BlockSpec((1, cin, tm_eff), lambda i, j: (i, 0, j)),
                w_spec,
                b_spec,
            ],
            out_specs=pl.BlockSpec((1, cout, tm_eff), lambda i, j: (i, 0, j)),
        ),
        compiler_params=pltpu.CompilerParams(
            dimension_semantics=("parallel", "parallel")),
    )(x3d, w2d, b_arg)

    return out3d.reshape(n, cout, h, wd)              # (N, Cout, H, W)


# ----------------------------------------------------------------------------
# ModuleEMA equivalent
# ----------------------------------------------------------------------------
class ModuleEMA:
    """JAX/Pallas equivalent of ModuleEMA(src, placement='same', momentum=...).

    dst = copy of src at init, kept as ONE flat f32 (rows, 512) master buffer.
    src is ALSO kept as a persistent flat buffer (native dtype), so update()
    is a single fused in-place Pallas kernel with no wrapper-side data motion.
    Training loops should mutate `src_flat2d` (or use set_src_flat); set_src()
    with a pytree is the convenience/slow path that repacks once.
    """

    def __init__(self, src_params, momentum=0.9999):
        self.momentum = float(momentum)

        leaves, treedef = jax.tree_util.tree_flatten(src_params)
        self._treedef = treedef
        self._shapes = [l.shape for l in leaves]
        self._dtypes = [l.dtype for l in leaves]
        self._sizes = [int(l.size) for l in leaves]
        self._is_float = [bool(jnp.issubdtype(l.dtype, jnp.floating))
                          for l in leaves]
        # Non-float leaves (e.g. num_batches_tracked) are excluded from the EMA
        # (matches the PyTorch module, which skips them on update).
        self._static_leaves = [None if f else l
                               for l, f in zip(leaves, self._is_float)]

        float_leaves = [l for l, f in zip(leaves, self._is_float) if f]
        assert float_leaves, "ModuleEMA needs at least one float leaf"
        self._src_dtype = jnp.result_type(*[l.dtype for l in float_leaves])
        self._float_total = sum(int(l.size) for l in float_leaves)
        self._rows = max(1, -(-self._float_total // _EMA_LANES))

        # Persistent flat buffers: src (native dtype) and dst (f32 master).
        self.src_flat2d = self._pack(float_leaves, self._src_dtype)
        self.dst_flat2d = self._pack(float_leaves, jnp.float32)

        self._dst_cache = None
        self._update_fn = jax.jit(_ema_update_flat, donate_argnums=(2,))

    # -- packing helpers -----------------------------------------------------
    def _pack(self, float_leaves, dtype):
        flat = jnp.concatenate(
            [jnp.ravel(l).astype(dtype) for l in float_leaves])
        pad = self._rows * _EMA_LANES - self._float_total
        if pad:
            flat = jnp.pad(flat, (0, pad))
        return flat.reshape(self._rows, _EMA_LANES)

    # -- src management ------------------------------------------------------
    def set_src(self, new_src_params):
        """Slow path: repack a pytree of src params into the flat src buffer."""
        leaves = jax.tree_util.tree_leaves(new_src_params)
        float_leaves = [l for l, f in zip(leaves, self._is_float) if f]
        self.src_flat2d = self._pack(float_leaves, self._src_dtype)

    def set_src_flat(self, src_flat2d):
        """Fast path: trainer already keeps params in the flat layout."""
        assert src_flat2d.shape == (self._rows, _EMA_LANES)
        self.src_flat2d = src_flat2d

    # -- EMA update ----------------------------------------------------------
    def update(self):
        mom = jnp.full((1, 1), self.momentum, jnp.float32)
        self.dst_flat2d = self._update_fn(mom, self.src_flat2d, self.dst_flat2d)
        self._dst_cache = None

    # -- dst reconstruction & forward ----------------------------------------
    def dst_params(self):
        """Reconstruct (and cache) the dst parameter pytree."""
        if self._dst_cache is None:
            flat = self.dst_flat2d.reshape(-1)
            leaves, off = [], 0
            for shape, dtype, size, is_f, static in zip(
                    self._shapes, self._dtypes, self._sizes,
                    self._is_float, self._static_leaves):
                if is_f:
                    leaves.append(
                        flat[off:off + size].reshape(shape).astype(dtype))
                    off += size
                else:
                    leaves.append(static)
            self._dst_cache = jax.tree_util.tree_unflatten(self._treedef, leaves)
        return self._dst_cache

    def forward(self, x):
        # no_grad is implicit: we only run a forward computation.
        return dst_forward(x, self.dst_params())


# ----------------------------------------------------------------------------
# Demo / smoke test
# ----------------------------------------------------------------------------
if __name__ == "__main__":
    key = jax.random.PRNGKey(0)
    k_x, k_w, k_b, k_dw, k_db = jax.random.split(key, 5)

    N, Cin, H, W = 2, 4, 16, 16
    Cout = 8
    momentum = 0.9

    # Source module parameters (Conv2d(4, 8, 1) + ReLU), deterministic init.
    src_params = {
        "weight": jax.random.normal(k_w, (Cout, Cin, 1, 1), jnp.float32) * 0.1,
        "bias": jax.random.normal(k_b, (Cout,), jnp.float32) * 0.1,
    }

    ema = ModuleEMA(src_params, momentum=momentum)

    # Simulate one "training step" on src, then run the fused EMA update.
    trained_src = {
        "weight": src_params["weight"]
        + 0.05 * jax.random.normal(k_dw, (Cout, Cin, 1, 1), jnp.float32),
        "bias": src_params["bias"]
        + 0.05 * jax.random.normal(k_db, (Cout,), jnp.float32),
    }
    ema.set_src(trained_src)   # one repack; training loops can use set_src_flat
    ema.update()               # fused, in-place Pallas blend (no extra passes)

    # Forward pass of the EMA (dst) module via the channel-major Pallas kernel.
    x = jax.random.normal(k_x, (N, Cin, H, W), jnp.float32)
    y = jax.block_until_ready(ema.forward(x))

    # Reference in plain JAX: dst = m*src_init + (1-m)*trained_src, then conv.
    ref_params = jax.tree_util.tree_map(
        lambda s, d: momentum * d + (1.0 - momentum) * s,
        trained_src, src_params)
    w2d_ref = ref_params["weight"].reshape(Cout, Cin)
    y_ref = jnp.einsum("oc,nchw->nohw", w2d_ref, x) \
        + ref_params["bias"][None, :, None, None]
    y_ref = jnp.maximum(y_ref, 0.0)

    # Check the EMA-updated parameters themselves.
    dstp = ema.dst_params()
    for a, b in zip(jax.tree_util.tree_leaves(dstp),
                    jax.tree_util.tree_leaves(ref_params)):
        assert jnp.allclose(a, b, atol=1e-6, rtol=1e-6)

    assert y.shape == (N, Cout, H, W)
    assert jnp.allclose(y, y_ref, atol=1e-5, rtol=1e-5)
    print("KERNEL_OK")
</pallas_src>

<mosaic_0001>
module attributes {stable_mosaic.version = 11 : i64} {
  func.func @_ema_kernel(%arg0: i32, %arg1: memref<1x1xf32, #tpu.memory_space<smem>>, %arg2: memref<1x512xf32, #tpu.memory_space<vmem>>, %arg3: memref<1x512xf32, #tpu.memory_space<vmem>>, %arg4: memref<1x512xf32, #tpu.memory_space<vmem>>) attributes {dimension_semantics = [#tpu.dimension_semantics<parallel>], iteration_bounds = array<i64: 1>, scalar_prefetch = 0 : i64, scratch_operands = 0 : i64, tpu.core_type = #tpu.core_type<tc>, window_params = [{transform_indices = @transform_0, window_bounds = array<i64: 1, 1>}, {transform_indices = @transform_1, window_bounds = array<i64: 1, 512>}, {transform_indices = @transform_2, window_bounds = array<i64: 1, 512>}, {transform_indices = @transform_3, window_bounds = array<i64: 1, 512>}]} {
    %c0 = arith.constant 0 : index
    %c0_0 = arith.constant 0 : index
    %0 = memref.load %arg1[%c0, %c0_0] : memref<1x1xf32, #tpu.memory_space<smem>>
    %c0_1 = arith.constant 0 : index
    %c0_2 = arith.constant 0 : index
    %1 = vector.load %arg2[%c0_1, %c0_2] : memref<1x512xf32, #tpu.memory_space<vmem>>, vector<1x512xf32>
    %c0_3 = arith.constant 0 : index
    %c0_4 = arith.constant 0 : index
    %2 = vector.load %arg3[%c0_3, %c0_4] : memref<1x512xf32, #tpu.memory_space<vmem>>, vector<1x512xf32>
    %3 = vector.broadcast %0 : f32 to vector<1x512xf32>
    %4 = arith.mulf %3, %2 : vector<1x512xf32>
    %cst = arith.constant 1.000000e+00 : f32
    %5 = arith.subf %cst, %0 : f32
    %6 = vector.broadcast %5 : f32 to vector<1x512xf32>
    %7 = arith.mulf %6, %1 : vector<1x512xf32>
    %8 = arith.addf %4, %7 : vector<1x512xf32>
    %c0_5 = arith.constant 0 : index
    %c0_6 = arith.constant 0 : index
    %9 = vector.load %arg4[%c0_5, %c0_6] : memref<1x512xf32, #tpu.memory_space<vmem>>, vector<1x512xf32>
    tpu.vector_store %arg4[%c0_5, %c0_6], %8 {strides = array<i32>} : memref<1x512xf32, #tpu.memory_space<vmem>>, vector<1x512xf32>,
    return
  }
  func.func @transform_0(%arg0: i32) -> (i32, i32) {
    %c0_i32 = arith.constant 0 : i32
    %c0_i32_0 = arith.constant 0 : i32
    %c0_i32_1 = arith.constant 0 : i32
    return %c0_i32, %c0_i32_0 : i32, i32
  }
  func.func @transform_1(%arg0: i32) -> (i32, i32) {
    %c0_i32 = arith.constant 0 : i32
    %c0_i32_0 = arith.constant 0 : i32
    return %arg0, %c0_i32 : i32, i32
  }
  func.func @transform_2(%arg0: i32) -> (i32, i32) {
    %c0_i32 = arith.constant 0 : i32
    %c0_i32_0 = arith.constant 0 : i32
    return %arg0, %c0_i32 : i32, i32
  }
  func.func @transform_3(%arg0: i32) -> (i32, i32) {
    %c0_i32 = arith.constant 0 : i32
    %c0_i32_0 = arith.constant 0 : i32
    return %arg0, %c0_i32 : i32, i32
  }
}

</mosaic_0001>

<llo_original>
// kernel: _ema_update_flat.1
$region0: #{_ema_update_flat.1}
  #allocation0 [shape = 'u32[]', space=smem, size = 0x4, offset = 0x4, fixed_abs, tag = 'smem constant byte address 0x4 - core index']
  #allocation1 [shape = 'u32[72,128]{1,0:T(1,128)}', space=vmem, size = 0x9000, scoped, tag = 'internal scratch']
  #allocation2 [shape = 'f32[1,1]{1,0:T(1,128)S(6)}', space=smem, size = 0x200, scoped, tag = 'scoped memory for _ema_update_flat.1']
  %s0 = inlined_call_operand.<no memory space> [shape: f32[1,1], index: 0, kind: input, shape index: {}]
  %s1 = inlined_call_operand.hbm [shape: f32[1,512], index: 1, kind: input, shape index: {}]
  %s2 = inlined_call_operand.hbm [shape: f32[1,512], index: 2, kind: input, shape index: {}, may-alias: {2,3}]
  %s3 = inlined_call_operand.hbm [shape: f32[1,512], index: 3, kind: output, shape index: {}, may-alias: {2,3}]
  %s4 = sld [smem:[#allocation0]]
  $region30: #{_ema_update_flat.1} parent=0
    _
  %s6 = ssub.s32 1, %s4
  %s7 = scalar_select 0, %s6, %s4
  %8 = sst [smem:[#allocation2]] %s0
  $region1: #{_ema_update_flat.1} parent=0
    #allocation3 [shape = 'u8[2048]{0}', space=vmem, size = 0x800, scoped, tag = 'input window, operand 1, single buffered']
    #allocation4 [shape = 's32[1]{0}', space=sflag, size = 0x4, scoped, tag = 'scoped memory for _ema_update_flat.1']
    #allocation5 [shape = 's32[1]{0}', space=sflag, size = 0x4, scoped, tag = 'scoped memory for _ema_update_flat.1']
    #allocation6 [shape = 'u8[2048]{0}', space=vmem, size = 0x800, scoped, tag = 'input window, operand 2, single buffered']
    #allocation7 [shape = 's32[1]{0}', space=sflag, size = 0x4, scoped, tag = 'scoped memory for _ema_update_flat.1']
    #allocation8 [shape = 'u8[2048]{0}', space=vmem, size = 0x800, scoped, tag = 'output window, operand 0, single buffered']
    %9 = vsyncpa [#allocation4], 0
    %10 = vsyncpa [#allocation7], 0
    %11 = vsyncpa [#allocation5], 0
    // Predicated region
    $region2: #{_ema_update_flat.1} parent=1 // pred_check
      _
    $region3: #{_ema_update_flat.1} parent=1 // pred_check_branch
      %13 = sbr.rel (0) target = $region5
    $region4: #{_ema_update_flat.1} parent=1 // pred_region
      _
    $region5: #{_ema_update_flat.1} parent=1 // pred_fallthru
      _
    // Predicated region
    $region6: #{_ema_update_flat.1} parent=1 // pred_check
      _
    $region7: #{_ema_update_flat.1} parent=1 // pred_check_branch
      %15 = sbr.rel (0) target = $region9
    $region8: #{_ema_update_flat.1} parent=1 // pred_region
      %17 = vsyncadd [#allocation4], 0
      %s19 = sshll.u32 %s1, 4
      %s20 = int_to_ptr.hbm [resolvable:$true] %s19
      %s21 = sshll.u32 [#allocation3], 4
      %s22 = int_to_ptr.vmem [resolvable:$true] %s21
      %24 = dma.hbm_to_vmem [thread:$0]  %s20, 64, %s22, [#allocation4]
    $region9: #{_ema_update_flat.1} parent=1 // pred_fallthru
      _
    // Predicated region
    $region10: #{_ema_update_flat.1} parent=1 // pred_check
      _
    $region11: #{_ema_update_flat.1} parent=1 // pred_check_branch
      %26 = sbr.rel (0) target = $region13
    $region12: #{_ema_update_flat.1} parent=1 // pred_region
      %28 = vsyncadd [#allocation7], 0
      %s30 = sshll.u32 %s2, 4
      %s31 = int_to_ptr.hbm [resolvable:$true] %s30
      %s32 = sshll.u32 [#allocation6], 4
      %s33 = int_to_ptr.vmem [resolvable:$true] %s32
      %35 = dma.hbm_to_vmem [thread:$0]  %s31, 64, %s33, [#allocation7]
    $region13: #{_ema_update_flat.1} parent=1 // pred_fallthru
      _
    // Predicated region
    $region14: #{_ema_update_flat.1} parent=1 // pred_check
      _
    $region15: #{_ema_update_flat.1} parent=1 // pred_check_branch
      %37 = sbr.rel (0) target = $region17
    $region16: #{_ema_update_flat.1} parent=1 // pred_region
      %39 = dma.done [#allocation4], 64
    $region17: #{_ema_update_flat.1} parent=1 // pred_fallthru
      _
    // Predicated region
    $region18: #{_ema_update_flat.1} parent=1 // pred_check
      _
    $region19: #{_ema_update_flat.1} parent=1 // pred_check_branch
      %41 = sbr.rel (0) target = $region21
    $region20: #{_ema_update_flat.1} parent=1 // pred_region
      %43 = dma.done [#allocation7], 64
    $region21: #{_ema_update_flat.1} parent=1 // pred_fallthru
      _
    %s44 = sld [smem:[#allocation2]]
    %v45 = vld [vmem:[#allocation3] sm:$0xf]
    %v46 = vld [vmem:[#allocation6] sm:$0xf]
    %v47 = vstv %s44
    %v48 = vmul.f32 %v47, %v46
    %s49 = ssub.f32 1.0, %s44
    %v50 = vstv %s49
    %v51 = vmul.f32 %v50, %v45
    %v52 = vadd.f32 %v48, %v51
    %v53 = vlaneseq
    %vm54 = vcmp.ge.s32.totalorder %v53, 0
    %vm55 = vcmp.lt.s32.totalorder %v53, 512
    %vm56 = vmand %vm54, %vm55
    %57 = vst.msk [vmem:[#allocation8] sm:$0xf] %vm56, %v52
    // Predicated region
    $region22: #{_ema_update_flat.1} parent=1 // pred_check
      _
    $region23: #{_ema_update_flat.1} parent=1 // pred_check_branch
      %59 = sbr.rel (0) target = $region25
    $region24: #{_ema_update_flat.1} parent=1 // pred_region
      %61 = vsyncadd [#allocation5], 0
      %s63 = sshll.u32 [#allocation8], 4
      %s64 = int_to_ptr.vmem [resolvable:$true] %s63
      %s65 = sshll.u32 %s3, 4
      %s66 = int_to_ptr.hbm [resolvable:$true] %s65
      %68 = dma.vmem_to_hbm [thread:$0]  %s64, 64, %s66, [#allocation5]
    $region25: #{_ema_update_flat.1} parent=1 // pred_fallthru
      _
    // Predicated region
    $region26: #{_ema_update_flat.1} parent=1 // pred_check
      _
    $region27: #{_ema_update_flat.1} parent=1 // pred_check_branch
      %70 = sbr.rel (0) target = $region29
    $region28: #{_ema_update_flat.1} parent=1 // pred_region
      %72 = dma.done [#allocation5], 64
    $region29: #{_ema_update_flat.1} parent=1 // pred_fallthru
      _
    %73 = vsyncpa [#allocation4], 1
    %74 = vsyncpa [#allocation7], 1
    %75 = vsyncpa [#allocation5], 1

</llo_original>
